<compile_context>
chip_gen: v7x
topology: tpu7x:2x2x1
jax: 0.10.0
libtpu: 0.0.40
codegen_flags: <defaults>
</compile_context>

<pallas_src>
import functools

import jax
import jax.numpy as jnp
from jax.experimental import pallas as pl
from jax.experimental.pallas import tpu as pltpu

IN_F = 10      # nn.Linear in_features
OUT_F = 5      # nn.Linear out_features
LANES = 128    # lane-dense padded output width
TB_MAX = 1024  # batch tile rows for the tiled path (multiple of 8)


def _round_up(n: int, m: int) -> int:
    return ((n + m - 1) // m) * m


def prepack_params(weight, bias):
    """One-time prepack of torch-layout params for the kernel.

    weight: (OUT_F, IN_F) torch layout -> (IN_F, LANES) transposed, zero-padded
    bias:   (OUT_F,)                   -> (1, LANES)   zero-padded
    """
    w_packed = jnp.zeros((IN_F, LANES), dtype=weight.dtype)
    w_packed = w_packed.at[:, :OUT_F].set(weight.T)
    b_packed = jnp.zeros((1, LANES), dtype=bias.dtype)
    b_packed = b_packed.at[0, :OUT_F].set(bias)
    return w_packed, b_packed


def _linear_kernel(x_ref, w_ref, b_ref, o_ref):
    # x_ref: (TB, IN_F), w_ref: (IN_F, LANES), b_ref: (1, LANES), o_ref: (TB, LANES)
    # MXU matmul with f32 accumulation; lane-dense (128-wide) output tile so the
    # store is an unmasked full-width vst.  Bias broadcast is a single VPU add.
    acc = jnp.dot(x_ref[...], w_ref[...], preferred_element_type=jnp.float32)
    o_ref[...] = (acc + b_ref[...]).astype(o_ref.dtype)


@functools.partial(jax.jit, static_argnames=("tb_max",))
def aiayn_forward(x, w_packed, b_packed, *, tb_max=TB_MAX):
    """Equivalent of torch nn.Linear(10, 5): y = x @ weight.T + bias.

    Args:
      x:        (B, IN_F) float32
      w_packed: (IN_F, LANES) float32 (from prepack_params)
      b_packed: (1, LANES)   float32 (from prepack_params)
    Returns:
      (B, OUT_F) float32
    """
    B, in_f = x.shape
    assert in_f == IN_F

    # Batch tile: multiple of 8 (f32 sublane), capped at tb_max.
    tb = min(tb_max, _round_up(B, 8))
    b_pad = _round_up(B, tb)
    if b_pad != B:
        x = jnp.pad(x, ((0, b_pad - B), (0, 0)))

    if b_pad == tb:
        # Single tile: whole problem fits in VMEM -> no grid, no pipeline.
        out = pl.pallas_call(
            _linear_kernel,
            out_shape=jax.ShapeDtypeStruct((b_pad, LANES), x.dtype),
        )(x, w_packed, b_packed)
    else:
        # Tiled over the batch dim; weight/bias resident across all steps.
        grid = (b_pad // tb,)
        out = pl.pallas_call(
            _linear_kernel,
            out_shape=jax.ShapeDtypeStruct((b_pad, LANES), x.dtype),
            grid=grid,
            in_specs=[
                pl.BlockSpec((tb, IN_F), lambda i: (i, 0)),
                pl.BlockSpec((IN_F, LANES), lambda i: (0, 0)),
                pl.BlockSpec((1, LANES), lambda i: (0, 0)),
            ],
            out_specs=pl.BlockSpec((tb, LANES), lambda i: (i, 0)),
            compiler_params=pltpu.CompilerParams(
                dimension_semantics=("parallel",),
            ),
        )(x, w_packed, b_packed)

    return out[:B, :OUT_F]


def _ref_forward(x, weight, bias):
    return x @ weight.T + bias


if __name__ == "__main__":
    key = jax.random.PRNGKey(0)
    kx, kw, kb, kx2 = jax.random.split(key, 4)

    # Deterministic parameter init mimicking torch's nn.Linear default
    # (uniform in [-1/sqrt(fan_in), 1/sqrt(fan_in)]).
    bound = 1.0 / jnp.sqrt(jnp.float32(IN_F))
    weight = jax.random.uniform(kw, (OUT_F, IN_F), jnp.float32, -bound, bound)
    bias = jax.random.uniform(kb, (OUT_F,), jnp.float32, -bound, bound)

    # One-time prepack (done outside the forward pass).
    w_packed, b_packed = prepack_params(weight, bias)

    # Small-batch path (single tile, no grid).
    x_small = jax.random.normal(kx, (8, IN_F), jnp.float32)
    y_small = jax.block_until_ready(aiayn_forward(x_small, w_packed, b_packed))
    y_small_ref = _ref_forward(x_small, weight, bias)
    assert y_small.shape == (8, OUT_F)
    assert jnp.allclose(y_small, y_small_ref, atol=1e-5, rtol=1e-5), \
        "small-batch mismatch vs reference"

    # Batched path (tiled over batch, parallel grid axis, resident weights).
    x_big = jax.random.normal(kx2, (2048, IN_F), jnp.float32)
    y_big = jax.block_until_ready(aiayn_forward(x_big, w_packed, b_packed))
    y_big_ref = _ref_forward(x_big, weight, bias)
    assert y_big.shape == (2048, OUT_F)
    assert jnp.allclose(y_big, y_big_ref, atol=1e-5, rtol=1e-5), \
        "batched mismatch vs reference"

    print("KERNEL_OK")
</pallas_src>

<mosaic_0001>
module attributes {stable_mosaic.version = 11 : i64} {
  func.func @_linear_kernel(%arg0: memref<8x10xf32, #tpu.memory_space<vmem>>, %arg1: memref<10x128xf32, #tpu.memory_space<vmem>>, %arg2: memref<1x128xf32, #tpu.memory_space<vmem>>, %arg3: memref<8x128xf32, #tpu.memory_space<vmem>>) attributes {dimension_semantics = [], scalar_prefetch = 0 : i64, scratch_operands = 0 : i64, tpu.core_type = #tpu.core_type<tc>} {
    %c0 = arith.constant 0 : index
    %c0_0 = arith.constant 0 : index
    %0 = vector.load %arg0[%c0, %c0_0] : memref<8x10xf32, #tpu.memory_space<vmem>>, vector<8x10xf32>
    %c0_1 = arith.constant 0 : index
    %c0_2 = arith.constant 0 : index
    %1 = vector.load %arg1[%c0_1, %c0_2] : memref<10x128xf32, #tpu.memory_space<vmem>>, vector<10x128xf32>
    %cst = arith.constant dense<0.000000e+00> : vector<8x128xf32>
    %2 = tpu.matmul %0, %1, %cst {dimension_numbers = #tpu.dot_dimension_numbers<[1], [0], [0], [1], [0, 0, 1, 1], [], []>} : vector<8x10xf32>, vector<10x128xf32>, vector<8x128xf32> -> vector<8x128xf32>
    %c0_3 = arith.constant 0 : index
    %c0_4 = arith.constant 0 : index
    %3 = vector.load %arg2[%c0_3, %c0_4] : memref<1x128xf32, #tpu.memory_space<vmem>>, vector<1x128xf32>
    %4 = vector.broadcast %3 : vector<1x128xf32> to vector<8x128xf32>
    %5 = arith.addf %2, %4 : vector<8x128xf32>
    %c0_5 = arith.constant 0 : index
    %c0_6 = arith.constant 0 : index
    %6 = vector.load %arg3[%c0_5, %c0_6] : memref<8x128xf32, #tpu.memory_space<vmem>>, vector<8x128xf32>
    tpu.vector_store %arg3[%c0_5, %c0_6], %5 {strides = array<i32>} : memref<8x128xf32, #tpu.memory_space<vmem>>, vector<8x128xf32>,
    return
  }
}

</mosaic_0001>

<llo_original>
// kernel: aiayn_forward.1
$region0: #{aiayn_forward.1}
  #allocation0 [shape = 'u32[]', space=smem, size = 0x4, offset = 0x4, fixed_abs, tag = 'smem constant byte address 0x4 - core index']
  #allocation1 [shape = 'u32[144,128]{1,0:T(1,128)}', space=vmem, size = 0x12000, scoped, tag = 'internal scratch']
  %s0 = inlined_call_operand.hbm [shape: f32[8,10], index: 0, kind: input, shape index: {}]
  %s1 = inlined_call_operand.hbm [shape: f32[10,128], index: 1, kind: input, shape index: {}]
  %s2 = inlined_call_operand.vmem [shape: f32[1,128], index: 2, kind: input, shape index: {}]
  %s3 = inlined_call_operand.hbm [shape: f32[8,128], index: 3, kind: output, shape index: {}]
  %s4 = sld [smem:[#allocation0]]
  $region30: #{aiayn_forward.1} parent=0
    _
  %s6 = ssub.s32 1, %s4
  %s7 = scalar_select 0, %s6, %s4
  $region1: #{aiayn_forward.1} parent=0
    #allocation2 [shape = 'u8[4096]{0}', space=vmem, size = 0x1000, scoped, tag = 'input window, operand 0, single buffered']
    #allocation3 [shape = 's32[1]{0}', space=sflag, size = 0x4, scoped, tag = 'scoped memory for aiayn_forward.1']
    #allocation4 [shape = 's32[1]{0}', space=sflag, size = 0x4, scoped, tag = 'scoped memory for aiayn_forward.1']
    #allocation5 [shape = 'u8[8192]{0}', space=vmem, size = 0x2000, scoped, tag = 'input window, operand 1, single buffered']
    #allocation6 [shape = 's32[1]{0}', space=sflag, size = 0x4, scoped, tag = 'scoped memory for aiayn_forward.1']
    #allocation7 [shape = 'u8[4096]{0}', space=vmem, size = 0x1000, scoped, tag = 'output window, operand 0, single buffered']
    %8 = vsyncpa [#allocation3], 0
    %9 = vsyncpa [#allocation6], 0
    %10 = vsyncpa [#allocation4], 0
    // Predicated region
    $region2: #{aiayn_forward.1} parent=1 // pred_check
      _
    $region3: #{aiayn_forward.1} parent=1 // pred_check_branch
      %12 = sbr.rel (0) target = $region5
    $region4: #{aiayn_forward.1} parent=1 // pred_region
      %s14 = ssub.s32 128, 128
      %15 = vsyncadd [#allocation3], %s14
      %s17 = sshll.u32 [#allocation2], 4
      %s18 = int_to_ptr.vmem [resolvable:$true] %s17
      %20 = dma.hbm_to_vmem [thread:$0]  %s0, 128, %s18, [#allocation3]
    $region5: #{aiayn_forward.1} parent=1 // pred_fallthru
      _
    // Predicated region
    $region6: #{aiayn_forward.1} parent=1 // pred_check
      _
    $region7: #{aiayn_forward.1} parent=1 // pred_check_branch
      %22 = sbr.rel (0) target = $region9
    $region8: #{aiayn_forward.1} parent=1 // pred_region
      %s24 = ssub.s32 256, 256
      %25 = vsyncadd [#allocation6], %s24
      %s26 = sshll.u32 [#allocation5], 4
      %s27 = int_to_ptr.vmem [resolvable:$true] %s26
      %32 = dma.hbm_to_vmem [thread:$0]  %s1, 256, %s27, [#allocation6], 128, 128, 8
    $region9: #{aiayn_forward.1} parent=1 // pred_fallthru
      _
    // Predicated region
    $region10: #{aiayn_forward.1} parent=1 // pred_check
      _
    $region11: #{aiayn_forward.1} parent=1 // pred_check_branch
      %34 = sbr.rel (0) target = $region13
    $region12: #{aiayn_forward.1} parent=1 // pred_region
      _
    $region13: #{aiayn_forward.1} parent=1 // pred_fallthru
      _
    // Predicated region
    $region14: #{aiayn_forward.1} parent=1 // pred_check
      _
    $region15: #{aiayn_forward.1} parent=1 // pred_check_branch
      %36 = sbr.rel (0) target = $region17
    $region16: #{aiayn_forward.1} parent=1 // pred_region
      %37 = dma.done [#allocation3], 128
    $region17: #{aiayn_forward.1} parent=1 // pred_fallthru
      _
    // Predicated region
    $region18: #{aiayn_forward.1} parent=1 // pred_check
      _
    $region19: #{aiayn_forward.1} parent=1 // pred_check_branch
      %39 = sbr.rel (0) target = $region21
    $region20: #{aiayn_forward.1} parent=1 // pred_region
      %40 = dma.done [#allocation6], 256
    $region21: #{aiayn_forward.1} parent=1 // pred_fallthru
      _
    %v41 = vld [vmem:[#allocation2] sm:$0xff]
    %v42 = vld [vmem:[#allocation5] sm:$0xff]
    %v43 = vld [vmem:[#allocation5 + $0x8] sm:$0x3]
    %v44 = vld [vmem:[%s2] sm:$0x1]
    %v46 = vlaneseq
    %v47 = vshrl.u32 %v46, 7
    %v48 = vsub.s32 0, %v47
    %v49 = vrot.slane %v44, %v48
    %vm51 = vcmask 80896
    %v53 = vsel %vm51, %v41, 0
    %vm55 = vcmask 1041408
    %v57 = vsel %vm55, %v43, 0
    %59 = vmatprep.subr.mxu0 0.0
    %60 = vmatpush1.msra.mxu0 %v42
    %61 = vmatprep.subr.mxu0 0.0
    %62 = vmatpush1.msra.mxu0 %v57
    %63 = vmatprep.subr.mxu0 0.0
    %64 = vmatpush1.msra.mxu0 0.0
    %65 = vmatprep.subr.mxu0 0.0
    %66 = vmatpush1.msra.mxu0 0.0
    %67 = vmatprep.subr.mxu0 0.0
    %68 = vmatpush1.msra.mxu0 0.0
    %69 = vmatprep.subr.mxu0 0.0
    %70 = vmatpush1.msra.mxu0 0.0
    %71 = vmatprep.subr.mxu0 0.0
    %72 = vmatpush1.msra.mxu0 0.0
    %73 = vmatprep.subr.mxu0 0.0
    %74 = vmatpush1.msra.mxu0 0.0
    %75 = vmatprep.subr.mxu0 0.0
    %76 = vmatpush1.msra.mxu0 0.0
    %77 = vmatprep.subr.mxu0 0.0
    %78 = vmatpush1.msra.mxu0 0.0
    %79 = vmatprep.subr.mxu0 0.0
    %80 = vmatpush1.msra.mxu0 0.0
    %81 = vmatprep.subr.mxu0 0.0
    %82 = vmatpush1.msra.mxu0 0.0
    %83 = vmatprep.subr.mxu0 0.0
    %84 = vmatpush1.msra.mxu0 0.0
    %85 = vmatprep.subr.mxu0 0.0
    %86 = vmatpush1.msra.mxu0 0.0
    %87 = vmatprep.subr.mxu0 0.0
    %88 = vmatpush1.msra.mxu0 0.0
    %89 = vmatprep.subr.mxu0 0.0
    %90 = vmatpush1.msra.mxu0 0.0
    %91 = vmatprep.subr.mxu0 0.0
    %92 = vmatpush1.msra.mxu0 0.0
    %93 = vmatprep.subr.mxu0 0.0
    %94 = vmatpush1.msra.mxu0 0.0
    %95 = vmatprep.subr.mxu0 0.0
    %96 = vmatpush1.msra.mxu0 0.0
    %97 = vmatprep.subr.mxu0 0.0
    %98 = vmatpush1.msra.mxu0 0.0
    %99 = vmatprep.subr.mxu0 0.0
    %100 = vmatpush1.msra.mxu0 0.0
    %101 = vmatprep.subr.mxu0 0.0
    %102 = vmatpush1.msra.mxu0 0.0
    %103 = vmatprep.subr.mxu0 0.0
    %104 = vmatpush1.msra.mxu0 0.0
    %105 = vmatprep.subr.mxu0 0.0
    %106 = vmatpush1.msra.mxu0 0.0
    %107 = vmatprep.subr.mxu0 0.0
    %108 = vmatpush1.msra.mxu0 0.0
    %109 = vmatprep.subr.mxu0 0.0
    %110 = vmatpush1.msra.mxu0 0.0
    %111 = vmatprep.subr.mxu0 0.0
    %112 = vmatpush1.msra.mxu0 0.0
    %113 = vmatprep.subr.mxu0 0.0
    %114 = vmatpush1.msra.mxu0 0.0
    %115 = vmatprep.subr.mxu0 0.0
    %116 = vmatpush1.msra.mxu0 0.0
    %117 = vmatprep.subr.mxu0 0.0
    %118 = vmatpush1.msra.mxu0 0.0
    %119 = vmatprep.subr.mxu0 0.0
    %120 = vmatpush1.msra.mxu0 0.0
    %121 = vmatprep.subr.mxu0 0.0
    %122 = vmatpush1.msra.mxu0 0.0
    %123 = vmatprep.mubr.f32.mxu0 0.0
    %124 = vmatmul.mubr.f32.gmra.mrb[0].mxu0 %v53
    %v125 = vpop.f32.mrb[0].mxu0
    %v126 = vadd.f32 %v49, %v125
    %v127 = vpop.f32.mrb[0].mxu0
    %128 = vdwg.mxu0
    %129 = vst [vmem:[#allocation7] sm:$0xff] %v126
    // Predicated region
    $region22: #{aiayn_forward.1} parent=1 // pred_check
      _
    $region23: #{aiayn_forward.1} parent=1 // pred_check_branch
      %131 = sbr.rel (0) target = $region25
    $region24: #{aiayn_forward.1} parent=1 // pred_region
      %s133 = ssub.s32 128, 128
      %134 = vsyncadd [#allocation4], %s133
      %s136 = sshll.u32 [#allocation7], 4
      %s137 = int_to_ptr.vmem [resolvable:$true] %s136
      %139 = dma.vmem_to_hbm [thread:$0]  %s137, 128, %s3, [#allocation4]
    $region25: #{aiayn_forward.1} parent=1 // pred_fallthru
      _
    // Predicated region
    $region26: #{aiayn_forward.1} parent=1 // pred_check
      _
    $region27: #{aiayn_forward.1} parent=1 // pred_check_branch
      %141 = sbr.rel (0) target = $region29
    $region28: #{aiayn_forward.1} parent=1 // pred_region
      %142 = dma.done [#allocation4], 128
    $region29: #{aiayn_forward.1} parent=1 // pred_fallthru
      _
    %143 = vsyncpa [#allocation3], 1
    %144 = vsyncpa [#allocation6], 1
    %145 = vsyncpa [#allocation4], 1

</llo_original>
